<compile_context>
chip_gen: v6e
topology: v6e:2x2x1
jax: 0.10.0
libtpu: 0.0.40
codegen_flags: <defaults>
</compile_context>

<pallas_src>
import jax
import jax.numpy as jnp
import numpy as np
from jax.experimental import pallas as pl
from jax.experimental.pallas import tpu as pltpu


# --------------------------------- kernels -----------------------------------
def _rows_linear_kernel(x_ref, wt_ref, b_ref, o_ref):
    # y = x @ W^T + b ;  x:(tm, K), wt:(K, P), b:(1, P) -> o:(tm, P)
    acc = jnp.dot(x_ref[...], wt_ref[...], preferred_element_type=jnp.float32)
    o_ref[...] = (acc + b_ref[...].astype(jnp.float32)).astype(o_ref.dtype)


def _channel_linear_kernel(x_ref, w_ref, b_ref, o_ref):
    # Fused transpose(1,-1) -> Linear -> transpose(1,-1): contract the channel
    # axis in place.  x:(1, emb, tS), w:(out, emb), b:(out, 1) -> o:(1, out, tS)
    acc = jnp.dot(w_ref[...], x_ref[0], preferred_element_type=jnp.float32)
    o_ref[0] = (acc + b_ref[...].astype(jnp.float32)).astype(o_ref.dtype)


# --------------------------------- wrappers -----------------------------------
def _linear_rows_pallas(x2d, weight, bias, *, tm=1024):
    """x2d: (N, emb); weight: (out, emb); bias: (out,) -> (N, out)."""
    n, emb = x2d.shape
    out_dim = weight.shape[0]
    wt = weight.T.astype(x2d.dtype)            # (emb, out)
    b1 = bias.astype(jnp.float32)              # (out,)

    # Lane-dense packing: fold `pack` consecutive rows into one row so the lane
    # (last) axis is ~128 wide on both the load and the store side.  The packed
    # matmul uses a block-diagonal W^T (kron(I_pack, W^T)) and a tiled bias.
    pack = 1
    if 0 < emb <= 128 and 0 < out_dim <= 128:
        pack = max(1, min(128 // emb, 128 // out_dim))
        while pack > 1 and n % pack != 0:
            pack //= 2
    if pack > 1:
        x2d = x2d.reshape(n // pack, pack * emb)                  # free reshape
        wt = jnp.kron(jnp.eye(pack, dtype=wt.dtype), wt)          # block-diag
        b1 = jnp.tile(b1, (pack,))

    m, kdim = x2d.shape
    pdim = wt.shape[1]
    b2 = b1.reshape(1, pdim)

    # No jnp.pad / output slice: cdiv grid + Pallas masking handles ragged N.
    tm_eff = m if m <= tm else tm
    grid = (pl.cdiv(m, tm_eff),)

    out = pl.pallas_call(
        _rows_linear_kernel,
        out_shape=jax.ShapeDtypeStruct((m, pdim), x2d.dtype),
        grid_spec=pltpu.PrefetchScalarGridSpec(
            num_scalar_prefetch=0,
            grid=grid,
            in_specs=[
                pl.BlockSpec((tm_eff, kdim), lambda i: (i, 0)),   # row tile
                pl.BlockSpec((kdim, pdim), lambda i: (0, 0)),     # resident W^T
                pl.BlockSpec((1, pdim), lambda i: (0, 0)),        # bias
            ],
            out_specs=pl.BlockSpec((tm_eff, pdim), lambda i: (i, 0)),
        ),
        compiler_params=pltpu.CompilerParams(
            dimension_semantics=("parallel",)),
    )(x2d, wt, b2)
    return out.reshape(n, out_dim)


def _linear_channel_pallas(x3d, weight, bias, *, ts=2048):
    """x3d: (B, emb, S); weight: (out, emb); bias: (out,) -> (B, out, S).

    Channel axis (axis 1) is contracted inside the kernel, so the PyTorch-side
    transpose(1, -1) pair is never materialized in HBM.
    """
    b, emb, s = x3d.shape
    out_dim = weight.shape[0]
    w = weight.astype(x3d.dtype)                       # (out, emb)
    b2 = bias.astype(jnp.float32).reshape(out_dim, 1)  # (out, 1)

    ts_eff = s if s <= ts else ts
    grid = (b, pl.cdiv(s, ts_eff))

    out = pl.pallas_call(
        _channel_linear_kernel,
        out_shape=jax.ShapeDtypeStruct((b, out_dim, s), x3d.dtype),
        grid_spec=pltpu.PrefetchScalarGridSpec(
            num_scalar_prefetch=0,
            grid=grid,
            in_specs=[
                pl.BlockSpec((1, emb, ts_eff), lambda i, j: (i, 0, j)),
                pl.BlockSpec((out_dim, emb), lambda i, j: (0, 0)),
                pl.BlockSpec((out_dim, 1), lambda i, j: (0, 0)),
            ],
            out_specs=pl.BlockSpec((1, out_dim, ts_eff), lambda i, j: (i, 0, j)),
        ),
        compiler_params=pltpu.CompilerParams(
            dimension_semantics=("parallel", "parallel")),
    )(x3d, w, b2)
    return out


# --------------------------- Module equivalent --------------------------------
class LinearNodeV2Encoder:
    """JAX/Pallas port of ckgconv LinearNodeV2Encoder."""

    def __init__(self, emb_dim, out_dim, attr_name="pe", *, key=None):
        if key is None:
            key = jax.random.PRNGKey(0)
        k_w, k_b = jax.random.split(key)
        # torch.nn.Linear default init: U(-1/sqrt(emb_dim), 1/sqrt(emb_dim))
        bound = 1.0 / float(np.sqrt(emb_dim))
        self.weight = jax.random.uniform(
            k_w, (out_dim, emb_dim), jnp.float32, -bound, bound)
        self.bias = jax.random.uniform(
            k_b, (out_dim,), jnp.float32, -bound, bound)
        self.name = attr_name
        self.emb_dim = emb_dim
        self.out_dim = out_dim

    def __call__(self, batch):
        x = batch[self.name]
        if x.ndim > 2:
            # transpose(1,-1) -> Linear -> transpose(1,-1)  ==  contract axis 1.
            # Keep the native (B, emb, *spatial) layout; flatten spatial dims
            # (contiguous, free) and let the kernel contract the channel axis.
            lead = x.shape[0]
            spatial = x.shape[2:]
            x3d = x.reshape(lead, self.emb_dim, -1)
            y3d = _linear_channel_pallas(x3d, self.weight, self.bias)
            y = y3d.reshape((lead, self.out_dim) + spatial)
        elif x.ndim == 2:
            y = _linear_rows_pallas(x, self.weight, self.bias)
        else:  # 1-D feature vector
            y = _linear_rows_pallas(
                x.reshape(1, -1), self.weight, self.bias).reshape(self.out_dim)
        batch[self.name] = y
        return batch


# ----------------------------------- main --------------------------------------
if __name__ == "__main__":
    emb_dim, out_dim = 32, 32
    enc = LinearNodeV2Encoder(emb_dim, out_dim, attr_name="pe",
                              key=jax.random.PRNGKey(0))

    key = jax.random.PRNGKey(0)
    k1, k2, k3 = jax.random.split(key, 3)

    # Case 1: 2-D node features (num_nodes, emb_dim) -> packed lane-dense path
    pe_2d = jax.random.normal(k1, (12, emb_dim), jnp.float32)
    out_2d = jax.block_until_ready(enc({"pe": pe_2d})["pe"])

    # Case 2: 3-D features (batch, emb_dim, seq) -> fused channel-contraction
    pe_3d = jax.random.normal(k2, (2, emb_dim, 8), jnp.float32)
    out_3d = jax.block_until_ready(enc({"pe": pe_3d})["pe"])

    # Case 3: 4-D features (batch, emb_dim, h, w) -> fused channel-contraction
    pe_4d = jax.random.normal(k3, (2, emb_dim, 4, 6), jnp.float32)
    out_4d = jax.block_until_ready(enc({"pe": pe_4d})["pe"])

    # Pure-JAX references matching the PyTorch module exactly.
    ref_2d = pe_2d @ enc.weight.T + enc.bias
    ref_3d = jnp.swapaxes(
        jnp.swapaxes(pe_3d, 1, -1) @ enc.weight.T + enc.bias, 1, -1)
    ref_4d = jnp.swapaxes(
        jnp.swapaxes(pe_4d, 1, -1) @ enc.weight.T + enc.bias, 1, -1)

    np.testing.assert_allclose(np.asarray(out_2d), np.asarray(ref_2d),
                               rtol=1e-5, atol=1e-5)
    np.testing.assert_allclose(np.asarray(out_3d), np.asarray(ref_3d),
                               rtol=1e-5, atol=1e-5)
    np.testing.assert_allclose(np.asarray(out_4d), np.asarray(ref_4d),
                               rtol=1e-5, atol=1e-5)
    assert out_2d.shape == (12, out_dim)
    assert out_3d.shape == (2, out_dim, 8)
    assert out_4d.shape == (2, out_dim, 4, 6)

    print("KERNEL_OK")
</pallas_src>

<mosaic_0001>
module attributes {stable_mosaic.version = 11 : i64} {
  func.func @_rows_linear_kernel(%arg0: i32, %arg1: memref<3x128xf32, #tpu.memory_space<vmem>>, %arg2: memref<128x128xf32, #tpu.memory_space<vmem>>, %arg3: memref<1x128xf32, #tpu.memory_space<vmem>>, %arg4: memref<3x128xf32, #tpu.memory_space<vmem>>) attributes {dimension_semantics = [#tpu.dimension_semantics<parallel>], iteration_bounds = array<i64: 1>, scalar_prefetch = 0 : i64, scratch_operands = 0 : i64, tpu.core_type = #tpu.core_type<tc>, window_params = [{transform_indices = @transform_0, window_bounds = array<i64: 3, 128>}, {pipeline_mode = #tpu.pipeline_mode<synchronous>, transform_indices = @transform_1, window_bounds = array<i64: 128, 128>}, {pipeline_mode = #tpu.pipeline_mode<synchronous>, transform_indices = @transform_2, window_bounds = array<i64: 1, 128>}, {transform_indices = @transform_3, window_bounds = array<i64: 3, 128>}]} {
    %c0 = arith.constant 0 : index
    %c0_0 = arith.constant 0 : index
    %0 = vector.load %arg1[%c0, %c0_0] : memref<3x128xf32, #tpu.memory_space<vmem>>, vector<3x128xf32>
    %c0_1 = arith.constant 0 : index
    %c0_2 = arith.constant 0 : index
    %1 = vector.load %arg2[%c0_1, %c0_2] : memref<128x128xf32, #tpu.memory_space<vmem>>, vector<128x128xf32>
    %cst = arith.constant dense<0.000000e+00> : vector<3x128xf32>
    %2 = tpu.matmul %0, %1, %cst {dimension_numbers = #tpu.dot_dimension_numbers<[1], [0], [0], [1], [0, 0, 1, 1], [], []>} : vector<3x128xf32>, vector<128x128xf32>, vector<3x128xf32> -> vector<3x128xf32>
    %c0_3 = arith.constant 0 : index
    %c0_4 = arith.constant 0 : index
    %3 = vector.load %arg3[%c0_3, %c0_4] : memref<1x128xf32, #tpu.memory_space<vmem>>, vector<1x128xf32>
    %4 = vector.broadcast %3 : vector<1x128xf32> to vector<3x128xf32>
    %5 = arith.addf %2, %4 : vector<3x128xf32>
    %c0_5 = arith.constant 0 : index
    %c0_6 = arith.constant 0 : index
    %6 = vector.load %arg4[%c0_5, %c0_6] : memref<3x128xf32, #tpu.memory_space<vmem>>, vector<3x128xf32>
    tpu.vector_store %arg4[%c0_5, %c0_6], %5 {strides = array<i32>} : memref<3x128xf32, #tpu.memory_space<vmem>>, vector<3x128xf32>,
    return
  }
  func.func @transform_0(%arg0: i32) -> (i32, i32) {
    %c0_i32 = arith.constant 0 : i32
    %c0_i32_0 = arith.constant 0 : i32
    return %arg0, %c0_i32 : i32, i32
  }
  func.func @transform_1(%arg0: i32) -> (i32, i32) {
    %c0_i32 = arith.constant 0 : i32
    %c0_i32_0 = arith.constant 0 : i32
    %c0_i32_1 = arith.constant 0 : i32
    return %c0_i32, %c0_i32_0 : i32, i32
  }
  func.func @transform_2(%arg0: i32) -> (i32, i32) {
    %c0_i32 = arith.constant 0 : i32
    %c0_i32_0 = arith.constant 0 : i32
    %c0_i32_1 = arith.constant 0 : i32
    return %c0_i32, %c0_i32_0 : i32, i32
  }
  func.func @transform_3(%arg0: i32) -> (i32, i32) {
    %c0_i32 = arith.constant 0 : i32
    %c0_i32_0 = arith.constant 0 : i32
    return %arg0, %c0_i32 : i32, i32
  }
}

</mosaic_0001>

<llo_original>
// kernel: tpu_custom_call.1
$region0: #{tpu_custom_call.1}
  #allocation0 [shape = 'u32[]', space=smem, size = 0x4, offset = 0x4, fixed_abs, tag = 'smem constant byte address 0x4 - core index']
  #allocation1 [shape = 'u32[144,128]{1,0:T(1,128)}', space=vmem, size = 0x12000, scoped, tag = 'internal scratch']
  %s0 = inlined_call_operand.hbm [shape: f32[3,128], index: 0, kind: input, shape index: {}]
  %s1 = inlined_call_operand.hbm [shape: f32[128,128], index: 1, kind: input, shape index: {}]
  %s2 = inlined_call_operand.vmem [shape: f32[1,128], index: 2, kind: input, shape index: {}]
  %s3 = inlined_call_operand.hbm [shape: f32[3,128], index: 3, kind: output, shape index: {}]
  %s4 = sld [smem:[#allocation0]]
  $region30: #{tpu_custom_call.1} parent=0
    _
  %s6 = ssub.s32 1, %s4
  %s7 = scalar_select 0, %s6, %s4
  $region1: #{tpu_custom_call.1} parent=0
    #allocation2 [shape = 'u8[2048]{0}', space=vmem, size = 0x800, scoped, tag = 'input window, operand 0, single buffered']
    #allocation3 [shape = 's32[1]{0}', space=sflag, size = 0x4, scoped, tag = 'scoped memory for tpu_custom_call.1']
    #allocation4 [shape = 's32[1]{0}', space=sflag, size = 0x4, scoped, tag = 'scoped memory for tpu_custom_call.1']
    #allocation5 [shape = 'u8[65536]{0}', space=vmem, size = 0x10000, scoped, tag = 'input window, operand 1, single buffered']
    #allocation6 [shape = 's32[1]{0}', space=sflag, size = 0x4, scoped, tag = 'scoped memory for tpu_custom_call.1']
    #allocation7 [shape = 'u8[2048]{0}', space=vmem, size = 0x800, scoped, tag = 'output window, operand 0, single buffered']
    %8 = vsyncpa [#allocation3], 0
    %9 = vsyncpa [#allocation6], 0
    %10 = vsyncpa [#allocation4], 0
    // Predicated region
    $region2: #{tpu_custom_call.1} parent=1 // pred_check
      _
    $region3: #{tpu_custom_call.1} parent=1 // pred_check_branch
      %12 = sbr.rel (0) target = $region5
    $region4: #{tpu_custom_call.1} parent=1 // pred_region
      %s14 = ssub.s32 64, 64
      %15 = vsyncadd [#allocation3], %s14
      %s17 = sshll.u32 [#allocation2], 4
      %s18 = int_to_ptr.vmem [resolvable:$true] %s17
      %20 = dma.hbm_to_vmem [thread:$0]  %s0, 64, %s18, [#allocation3]
    $region5: #{tpu_custom_call.1} parent=1 // pred_fallthru
      _
    // Predicated region
    $region6: #{tpu_custom_call.1} parent=1 // pred_check
      _
    $region7: #{tpu_custom_call.1} parent=1 // pred_check_branch
      %22 = sbr.rel (0) target = $region9
    $region8: #{tpu_custom_call.1} parent=1 // pred_region
      %s24 = ssub.s32 2048, 2048
      %25 = vsyncadd [#allocation6], %s24
      %s26 = sshll.u32 [#allocation5], 4
      %s27 = int_to_ptr.vmem [resolvable:$true] %s26
      %32 = dma.hbm_to_vmem [thread:$0]  %s1, 2048, %s27, [#allocation6], 128, 128, 8
    $region9: #{tpu_custom_call.1} parent=1 // pred_fallthru
      _
    // Predicated region
    $region10: #{tpu_custom_call.1} parent=1 // pred_check
      _
    $region11: #{tpu_custom_call.1} parent=1 // pred_check_branch
      %34 = sbr.rel (0) target = $region13
    $region12: #{tpu_custom_call.1} parent=1 // pred_region
      _
    $region13: #{tpu_custom_call.1} parent=1 // pred_fallthru
      _
    // Predicated region
    $region14: #{tpu_custom_call.1} parent=1 // pred_check
      _
    $region15: #{tpu_custom_call.1} parent=1 // pred_check_branch
      %36 = sbr.rel (0) target = $region17
    $region16: #{tpu_custom_call.1} parent=1 // pred_region
      %37 = dma.done [#allocation3], 64
    $region17: #{tpu_custom_call.1} parent=1 // pred_fallthru
      _
    // Predicated region
    $region18: #{tpu_custom_call.1} parent=1 // pred_check
      _
    $region19: #{tpu_custom_call.1} parent=1 // pred_check_branch
      %39 = sbr.rel (0) target = $region21
    $region20: #{tpu_custom_call.1} parent=1 // pred_region
      %40 = dma.done [#allocation6], 2048
    $region21: #{tpu_custom_call.1} parent=1 // pred_fallthru
      _
    %v41 = vld [vmem:[#allocation2] sm:$0x7]
    %v42 = vld [vmem:[#allocation5] sm:$0xff]
    %v43 = vld [vmem:[#allocation5 + $0x8] sm:$0xff]
    %v44 = vld [vmem:[#allocation5 + $0x10] sm:$0xff]
    %v45 = vld [vmem:[#allocation5 + $0x18] sm:$0xff]
    %v46 = vld [vmem:[#allocation5 + $0x20] sm:$0xff]
    %v47 = vld [vmem:[#allocation5 + $0x28] sm:$0xff]
    %v48 = vld [vmem:[#allocation5 + $0x30] sm:$0xff]
    %v49 = vld [vmem:[#allocation5 + $0x38] sm:$0xff]
    %v50 = vld [vmem:[#allocation5 + $0x40] sm:$0xff]
    %v51 = vld [vmem:[#allocation5 + $0x48] sm:$0xff]
    %v52 = vld [vmem:[#allocation5 + $0x50] sm:$0xff]
    %v53 = vld [vmem:[#allocation5 + $0x58] sm:$0xff]
    %v54 = vld [vmem:[#allocation5 + $0x60] sm:$0xff]
    %v55 = vld [vmem:[#allocation5 + $0x68] sm:$0xff]
    %v56 = vld [vmem:[#allocation5 + $0x70] sm:$0xff]
    %v57 = vld [vmem:[#allocation5 + $0x78] sm:$0xff]
    %v58 = vld [vmem:[%s2] sm:$0x1]
    %v60 = vlaneseq
    %v61 = vshrl.u32 %v60, 7
    %v62 = vsub.s32 0, %v61
    %v63 = vrot.slane %v58, %v62
    %65 = vmatprep.subr.mxu0 0.0
    %66 = vmatpush1.msra.mxu0 %v57
    %67 = vmatprep.subr.mxu0 0.0
    %68 = vmatpush1.msra.mxu0 %v56
    %69 = vmatprep.subr.mxu0 0.0
    %70 = vmatpush1.msra.mxu0 %v55
    %71 = vmatprep.subr.mxu0 0.0
    %72 = vmatpush1.msra.mxu0 %v54
    %73 = vmatprep.subr.mxu0 0.0
    %74 = vmatpush1.msra.mxu0 %v53
    %75 = vmatprep.subr.mxu0 0.0
    %76 = vmatpush1.msra.mxu0 %v52
    %77 = vmatprep.subr.mxu0 0.0
    %78 = vmatpush1.msra.mxu0 %v51
    %79 = vmatprep.subr.mxu0 0.0
    %80 = vmatpush1.msra.mxu0 %v50
    %81 = vmatprep.subr.mxu0 0.0
    %82 = vmatpush1.msra.mxu0 %v49
    %83 = vmatprep.subr.mxu0 0.0
    %84 = vmatpush1.msra.mxu0 %v48
    %85 = vmatprep.subr.mxu0 0.0
    %86 = vmatpush1.msra.mxu0 %v47
    %87 = vmatprep.subr.mxu0 0.0
    %88 = vmatpush1.msra.mxu0 %v46
    %89 = vmatprep.subr.mxu0 0.0
    %90 = vmatpush1.msra.mxu0 %v45
    %91 = vmatprep.subr.mxu0 0.0
    %92 = vmatpush1.msra.mxu0 %v44
    %93 = vmatprep.subr.mxu0 0.0
    %94 = vmatpush1.msra.mxu0 %v43
    %95 = vmatprep.subr.mxu0 0.0
    %96 = vmatpush1.msra.mxu0 %v42
    %97 = vmatprep.subr.mxu0 0.0
    %98 = vmatpush2.msra.mxu0 0.0
    %99 = vmatprep.subr.mxu0 0.0
    %100 = vmatpush2.msra.mxu0 0.0
    %101 = vmatprep.subr.mxu0 0.0
    %102 = vmatpush2.msra.mxu0 0.0
    %103 = vmatprep.subr.mxu0 0.0
    %104 = vmatpush2.msra.mxu0 0.0
    %105 = vmatprep.subr.mxu0 0.0
    %106 = vmatpush2.msra.mxu0 0.0
    %107 = vmatprep.subr.mxu0 0.0
    %108 = vmatpush2.msra.mxu0 0.0
    %109 = vmatprep.subr.mxu0 0.0
    %110 = vmatpush2.msra.mxu0 0.0
    %111 = vmatprep.subr.mxu0 0.0
    %112 = vmatpush2.msra.mxu0 0.0
    %113 = vmatprep.subr.mxu0 0.0
    %114 = vmatpush2.msra.mxu0 0.0
    %115 = vmatprep.subr.mxu0 0.0
    %116 = vmatpush2.msra.mxu0 0.0
    %117 = vmatprep.subr.mxu0 0.0
    %118 = vmatpush2.msra.mxu0 0.0
    %119 = vmatprep.subr.mxu0 0.0
    %120 = vmatpush2.msra.mxu0 0.0
    %121 = vmatprep.subr.mxu0 0.0
    %122 = vmatpush2.msra.mxu0 0.0
    %123 = vmatprep.subr.mxu0 0.0
    %124 = vmatpush2.msra.mxu0 0.0
    %125 = vmatprep.subr.mxu0 0.0
    %126 = vmatpush2.msra.mxu0 0.0
    %127 = vmatprep.subr.mxu0 0.0
    %128 = vmatpush2.msra.mxu0 0.0
    %129 = vmatprep.mubr.f32.mxu0 0.0
    %130 = vmatmul.mubr.f32.gmra.mxu0 %v41
    %v131 = vpop.f32.mrf.mxu0
    %v132 = vadd.f32 %v63, %v131
    %v133 = vpop.f32.mrf.mxu0
    %134 = vdwg.mxu0
    %135 = vst [vmem:[#allocation7] sm:$0x7] %v132
    // Predicated region
    $region22: #{tpu_custom_call.1} parent=1 // pred_check
      _
    $region23: #{tpu_custom_call.1} parent=1 // pred_check_branch
      %137 = sbr.rel (0) target = $region25
    $region24: #{tpu_custom_call.1} parent=1 // pred_region
      %s139 = ssub.s32 64, 64
      %140 = vsyncadd [#allocation4], %s139
      %s142 = sshll.u32 [#allocation7], 4
      %s143 = int_to_ptr.vmem [resolvable:$true] %s142
      %145 = dma.vmem_to_hbm [thread:$0]  %s143, 64, %s3, [#allocation4]
    $region25: #{tpu_custom_call.1} parent=1 // pred_fallthru
      _
    // Predicated region
    $region26: #{tpu_custom_call.1} parent=1 // pred_check
      _
    $region27: #{tpu_custom_call.1} parent=1 // pred_check_branch
      %147 = sbr.rel (0) target = $region29
    $region28: #{tpu_custom_call.1} parent=1 // pred_region
      %148 = dma.done [#allocation4], 64
    $region29: #{tpu_custom_call.1} parent=1 // pred_fallthru
      _
    %149 = vsyncpa [#allocation3], 1
    %150 = vsyncpa [#allocation6], 1
    %151 = vsyncpa [#allocation4], 1

</llo_original>
